<compile_context>
chip_gen: v7x
topology: tpu7x:2x2x1
jax: 0.10.0
libtpu: 0.0.40
codegen_flags: <defaults>
</compile_context>

<pallas_src>
import jax
import jax.numpy as jnp
from jax import lax
from jax.experimental import pallas as pl
from jax.experimental.pallas import tpu as pltpu


def _round_up(x, m):
    return (x + m - 1) // m * m


def _swish_f32(x):
    # sigmoid via EUP exp + approximate reciprocal (keeps the divide off the VALU).
    # TODO(synk): on v6e/v7x this could run in bf16 (2x EUP rate); kept f32 so the
    # same kernel stays v5e-safe (no bf16 EUP on v5e).
    return x * pl.reciprocal(1.0 + jnp.exp(-x), approx=True)


def _pick_tile_and_vmem():
    try:
        cap = int(pltpu.get_tpu_info().vmem_capacity_bytes)
    except Exception:
        cap = 128 * 1024 * 1024
    if cap >= 96 * 1024 * 1024:          # v5e / v6e (128 MiB VMEM)
        return 1024, 64 * 1024 * 1024
    return 512, 40 * 1024 * 1024         # v7x (64 MiB VMEM)


# ----------------------------- Pallas kernels ------------------------------ #
def _make_kernel(use_onehot, packed, h, n_pad):
    """Per-tile kernel body.

    packed (2*h <= 128): single output slab [TE, 128]; cols [0:h] = e1,
      cols [h:2h] = e2.  All e1-producing weights are duplicated across both
      column halves so that e2 = rbf1 * e1 is one elementwise multiply.
    unpacked (h > 64): two outputs [TE, H_pad] (e1, e2).
    """

    def kernel(*refs):
        if use_onehot:
            (i_ref, j_ref, rbf_ref, tab_ref,
             w_rbf_ref, b0_ref, w_r_ref, bl_ref, *outs) = refs
        else:
            (xw_ref, rbf_ref,
             w_rbf_ref, b0_ref, w_r_ref, bl_ref, *outs) = refs

        cdt = rbf_ref.dtype                                    # compute dtype (bf16)
        rbf = rbf_ref[...]                                      # [TE, R]

        # Fused rbf projection: lin_rbf_0 and lin_rbf_1 in one K=R matmul.
        rbf_proj = jnp.dot(rbf, w_rbf_ref[...],
                           preferred_element_type=jnp.float32)  # [TE, Wc] f32

        if packed:
            col = lax.broadcasted_iota(jnp.int32, rbf_proj.shape, 1)
            first = col < h                                      # e1-channel columns
            sw = _swish_f32(rbf_proj + b0_ref[...])
            # cols [0:h] -> rbf0 = swish(rbf@W0 + b0); cols [h:2h] -> rbf1 = rbf@W1.
            rbf_mix = jnp.where(first, sw, rbf_proj)             # [TE, P] f32
            lin_in = rbf_mix.astype(cdt)
        else:
            h_pad = w_r_ref.shape[0]
            rbf0 = _swish_f32(rbf_proj[:, :h_pad] + b0_ref[...])
            rbf1 = rbf_proj[:, h_pad:]
            lin_in = rbf0.astype(cdt)

        # xi@Wi + xj@Wj term (weights already folded into the node tables).
        if use_onehot:
            te = rbf.shape[0]
            iota = lax.broadcasted_iota(jnp.int32, (te, 2 * n_pad), 1)
            onehot = jnp.logical_or(iota == i_ref[...],
                                    iota == (j_ref[...] + n_pad)).astype(cdt)
            xw = jnp.dot(onehot, tab_ref[...],
                         preferred_element_type=jnp.float32)    # exact gather + sum
        else:
            xw = xw_ref[...].astype(jnp.float32)

        pre1 = (xw
                + jnp.dot(lin_in, w_r_ref[...],
                          preferred_element_type=jnp.float32)
                + bl_ref[...])
        e1 = _swish_f32(pre1)

        if packed:
            # cols [0:h]: e1 * 1 ; cols [h:2h]: e1 * rbf1 = e2 ; padding stays 0.
            outs[0][...] = (e1 * jnp.where(first, 1.0, rbf_mix)).astype(outs[0].dtype)
        else:
            outs[0][...] = e1.astype(outs[0].dtype)
            outs[1][...] = (rbf1 * e1).astype(outs[1].dtype)

    return kernel


# ------------------------------- Wrapper ----------------------------------- #
def init_v1_pallas(x_emb, i_idx, j_idx, rbf, params, *, tile_e=None,
                   compute_dtype=jnp.bfloat16, out_dtype=jnp.bfloat16,
                   node_gather_threshold=256):
    """x_emb: [N, H] node features; i_idx/j_idx: [E] ints; rbf: [E, R]."""
    N, H = x_emb.shape
    E, R = rbf.shape
    f32 = jnp.float32

    packed = (2 * H <= 128)
    use_onehot = (N <= node_gather_threshold)

    w0 = params["w_rbf0"].astype(f32)     # [R, H]
    w1 = params["w_rbf1"].astype(f32)     # [R, H]
    b0 = params["b_rbf0"].astype(f32)     # [1, H]
    wr = params["w_lin_r"].astype(f32)    # [H, H]
    bl = params["b_lin"].astype(f32)      # [1, H]
    wi = params["w_lin_i"].astype(f32)    # [H, H]
    wj = params["w_lin_j"].astype(f32)    # [H, H]

    # -------- weight preparation (channel layout) --------
    if packed:
        P = 128                                    # packed slab width (lane-dense)

        def place(a, b=None):                      # cols [0:H]=a, [H:2H]=b, rest 0
            z = jnp.zeros((a.shape[0], P), f32).at[:, :H].set(a)
            if b is not None:
                z = z.at[:, H:2 * H].set(b)
            return z

        w_rbf_cat = place(w0, w1).astype(compute_dtype)          # [R, P]
        b_rbf0_p = place(b0)                                     # [1, P] f32
        w_lin_r_p = (jnp.zeros((P, P), f32)
                     .at[:H, :H].set(wr)
                     .at[:H, H:2 * H].set(wr)
                     .astype(compute_dtype))                     # [P, P]
        b_lin_p = place(bl, bl)                                  # [1, P] f32
        dup_cols = lambda a: place(a, a)                         # duplicate e1 cols
        Wxw = P
        Wout = (P,)
    else:
        H_pad = _round_up(H, 128)
        padc = lambda a: jnp.pad(a, ((0, 0), (0, H_pad - a.shape[1])))
        w_rbf_cat = jnp.concatenate([padc(w0), padc(w1)], axis=1).astype(compute_dtype)
        b_rbf0_p = padc(b0)
        w_lin_r_p = jnp.pad(wr, ((0, H_pad - H), (0, H_pad - H))).astype(compute_dtype)
        b_lin_p = padc(bl)
        dup_cols = padc
        Wxw = H_pad
        Wout = (H_pad, H_pad)

    # -------- fold w_lin_i / w_lin_j into the node table (f32, cast to bf16 once) --
    x32 = x_emb.astype(f32)
    XWi = x32 @ wi                                   # [N, H] f32
    XWj = x32 @ wj

    # -------- edge tiling --------
    tile_e_auto, vmem_limit = _pick_tile_and_vmem()
    if tile_e is None:
        tile_e = tile_e_auto
    tile_e = max(32, min(_round_up(tile_e, 32), _round_up(E, 32)))
    E_pad = _round_up(E, tile_e)
    pad_e = E_pad - E

    rbf_c = rbf.astype(compute_dtype)
    if pad_e:
        rbf_c = jnp.pad(rbf_c, ((0, pad_e), (0, 0)))

    edge_r = pl.BlockSpec((tile_e, R), lambda e: (e, 0))
    edge_xw = pl.BlockSpec((tile_e, Wxw), lambda e: (e, 0))
    edge_1 = pl.BlockSpec((tile_e, 1), lambda e: (e, 0))
    full = lambda a: pl.BlockSpec(a.shape, lambda e: (0, 0))

    if use_onehot:
        # Stacked, (duplicated-column) node tables for the fused one-hot MXU gather.
        N_pad = _round_up(N, 128)
        tab = jnp.zeros((2 * N_pad, Wxw), f32)
        tab = tab.at[:N].set(dup_cols(XWi)).at[N_pad:N_pad + N].set(dup_cols(XWj))
        tab = tab.astype(compute_dtype)
        ii = i_idx.astype(jnp.int32)
        jj = j_idx.astype(jnp.int32)
        if pad_e:
            ii = jnp.pad(ii, (0, pad_e))
            jj = jnp.pad(jj, (0, pad_e))
        i2 = ii.reshape(E_pad, 1)
        j2 = jj.reshape(E_pad, 1)
        operands = (i2, j2, rbf_c, tab, w_rbf_cat, b_rbf0_p, w_lin_r_p, b_lin_p)
        in_specs = [edge_1, edge_1, edge_r, full(tab), full(w_rbf_cat),
                    full(b_rbf0_p), full(w_lin_r_p), full(b_lin_p)]
        n_pad_arg = N_pad
    else:
        # Pre-gathered edge stream: no [N, *]-sized block is VMEM-resident.
        xw_e = XWi[i_idx.astype(jnp.int32)] + XWj[j_idx.astype(jnp.int32)]  # [E,H] f32
        xw_e = dup_cols(xw_e).astype(compute_dtype)                         # [E, Wxw]
        if pad_e:
            xw_e = jnp.pad(xw_e, ((0, pad_e), (0, 0)))
        operands = (xw_e, rbf_c, w_rbf_cat, b_rbf0_p, w_lin_r_p, b_lin_p)
        in_specs = [edge_xw, edge_r, full(w_rbf_cat), full(b_rbf0_p),
                    full(w_lin_r_p), full(b_lin_p)]
        n_pad_arg = 0

    grid = (E_pad // tile_e,)
    if packed:
        out_shape = jax.ShapeDtypeStruct((E_pad, Wout[0]), out_dtype)
        out_specs = pl.BlockSpec((tile_e, Wout[0]), lambda e: (e, 0))
    else:
        out_shape = (jax.ShapeDtypeStruct((E_pad, Wout[0]), out_dtype),
                     jax.ShapeDtypeStruct((E_pad, Wout[1]), out_dtype))
        out_specs = (pl.BlockSpec((tile_e, Wout[0]), lambda e: (e, 0)),
                     pl.BlockSpec((tile_e, Wout[1]), lambda e: (e, 0)))

    # Advisory cost hint.
    Wc = w_rbf_cat.shape[1]
    Wr = w_lin_r_p.shape[0]
    flops = 2 * E_pad * (R * Wc + Wr * Wr)
    if use_onehot:
        flops += 2 * E_pad * (2 * n_pad_arg) * Wxw
    out_bytes = E_pad * sum(Wout) * jnp.dtype(out_dtype).itemsize
    in_bytes = E_pad * R * 2 + (E_pad * 8 if use_onehot else E_pad * Wxw * 2)
    cost = pl.CostEstimate(flops=int(flops),
                           transcendentals=int(2 * E_pad * Wc),
                           bytes_accessed=int(in_bytes + out_bytes))

    kernel = _make_kernel(use_onehot, packed, H, n_pad_arg)
    out = pl.pallas_call(
        kernel,
        out_shape=out_shape,
        grid=grid,
        in_specs=in_specs,
        out_specs=out_specs,
        compiler_params=pltpu.CompilerParams(
            dimension_semantics=("parallel",),
            vmem_limit_bytes=vmem_limit),
        cost_estimate=cost,
    )(*operands)

    # TODO(synk): downstream consumers could take the padded/packed slab directly
    # and skip this trailing XLA slice pass (pure memory traffic over the outputs).
    if packed:
        return out[:E, :H], out[:E, H:2 * H]
    e1, e2 = out
    return e1[:E, :H], e2[:E, :H]


# ------------------------------ Plain-JAX glue ----------------------------- #
def embedding_layer(v_f, emb_tables):
    """EmbeddingLayer.forward: sum of per-column embeddings ++ remaining columns."""
    num_layers = len(emb_tables)
    g = jnp.zeros((v_f.shape[0], emb_tables[0].shape[1]), jnp.float32)
    for k, tab in enumerate(emb_tables):
        idx = v_f[:, k].astype(jnp.int32)
        g = g + tab[idx]                                       # tiny gather (glue)
    res = v_f[:, num_layers:]
    return jnp.concatenate([g, res], axis=1)


def init_v1_forward(x, emb, i, j, params, **kwargs):
    rbf, _ = emb
    x_emb = embedding_layer(x, params["emb_tables"])           # [N, H]
    return init_v1_pallas(x_emb, i, j, rbf, params, **kwargs)


# Pure-JAX f32 reference (sanity check only).
def init_v1_reference(x, emb, i, j, params):
    rbf, _ = emb
    x_emb = embedding_layer(x, params["emb_tables"])
    swish = lambda t: t * jax.nn.sigmoid(t)
    rbf0 = swish(rbf @ params["w_rbf0"] + params["b_rbf0"])
    cat = jnp.concatenate([x_emb[i], x_emb[j], rbf0], axis=-1)
    w_lin = jnp.concatenate(
        [params["w_lin_i"], params["w_lin_j"], params["w_lin_r"]], axis=0)
    e1 = swish(cat @ w_lin + params["b_lin"])
    e2 = (rbf @ params["w_rbf1"]) * e1
    return e1, e2


# ------------------------------ Parameter init ----------------------------- #
def make_params(key, feature_list, num_radial, hidden_channels):
    H, R = hidden_channels, num_radial
    ks = jax.random.split(key, 6 + len(feature_list))
    emb_tables = []
    for word_num, k in zip(feature_list, ks[6:]):
        bound = (6.0 / (word_num + (H - 1))) ** 0.5
        emb_tables.append(jax.random.uniform(k, (word_num, H - 1), jnp.float32,
                                             -bound, bound))

    def lin_w(k, fan_in, fan_out):
        bound = (1.0 / fan_in) ** 0.5
        return jax.random.uniform(k, (fan_in, fan_out), jnp.float32, -bound, bound)

    w_lin_full = lin_w(ks[0], 3 * H, H)                         # lin: 3H -> H
    params = {
        "emb_tables": emb_tables,
        "w_rbf0": lin_w(ks[1], R, H),                           # lin_rbf_0: R -> H
        "b_rbf0": jax.random.uniform(ks[2], (1, H), jnp.float32,
                                     -(1.0 / R) ** 0.5, (1.0 / R) ** 0.5),
        "w_lin_i": w_lin_full[:H],
        "w_lin_j": w_lin_full[H:2 * H],
        "w_lin_r": w_lin_full[2 * H:],
        "b_lin": jax.random.uniform(ks[3], (1, H), jnp.float32,
                                    -(1.0 / (3 * H)) ** 0.5, (1.0 / (3 * H)) ** 0.5),
        # TODO(synk): glorot_orthogonal init approximated with glorot-uniform values.
        "w_rbf1": lin_w(ks[4], R, H),                           # lin_rbf_1: R -> H
    }
    return params


# ----------------------------------- main ---------------------------------- #
if __name__ == "__main__":
    key = jax.random.PRNGKey(0)
    feature_list = [5, 7]          # two categorical features
    num_radial = 8
    hidden_channels = 32
    N, E = 16, 32

    kx, kc, kr, ki, kj, kp = jax.random.split(key, 6)
    cat_cols = jnp.stack(
        [jax.random.randint(kx, (N,), 0, feature_list[0]).astype(jnp.float32),
         jax.random.randint(kc, (N,), 0, feature_list[1]).astype(jnp.float32)],
        axis=1)
    cont_col = jax.random.normal(kr, (N, 1), jnp.float32)
    x = jnp.concatenate([cat_cols, cont_col], axis=1)           # [N, 3]

    rbf = jax.random.normal(kp, (E, num_radial), jnp.float32)   # [E, R]
    sbf = jnp.zeros((E, 4), jnp.float32)                        # unused half of `emb`
    i_idx = jax.random.randint(ki, (E,), 0, N)
    j_idx = jax.random.randint(kj, (E,), 0, N)

    def check(got, ref):
        g = got.astype(jnp.float32)
        assert jnp.allclose(g, ref, atol=5e-2, rtol=5e-2), \
            float(jnp.max(jnp.abs(g - ref)))

    # --- Packed single-output layout (H=32) + fused one-hot MXU gather (small N).
    params = make_params(jax.random.PRNGKey(42), feature_list, num_radial,
                         hidden_channels)
    r1, r2 = init_v1_reference(x, (rbf, sbf), i_idx, j_idx, params)
    e1, e2 = init_v1_forward(x, (rbf, sbf), i_idx, j_idx, params)
    jax.block_until_ready((e1, e2))
    check(e1, r1)
    check(e2, r2)

    # --- Pre-gathered edge-stream path (forced; used automatically for larger N).
    e1b, e2b = init_v1_forward(x, (rbf, sbf), i_idx, j_idx, params,
                               node_gather_threshold=0)
    jax.block_until_ready((e1b, e2b))
    check(e1b, r1)
    check(e2b, r2)

    # --- Fallback two-output layout for H > 64.
    H2 = 96
    params2 = make_params(jax.random.PRNGKey(7), feature_list, num_radial, H2)
    r1c, r2c = init_v1_reference(x, (rbf, sbf), i_idx, j_idx, params2)
    e1c, e2c = init_v1_forward(x, (rbf, sbf), i_idx, j_idx, params2)
    jax.block_until_ready((e1c, e2c))
    check(e1c, r1c)
    check(e2c, r2c)

    print("KERNEL_OK")
</pallas_src>

<mosaic_0001>
module attributes {stable_mosaic.version = 11 : i64} {
  func.func @kernel(%arg0: i32, %arg1: memref<32x1xi32, #tpu.memory_space<vmem>>, %arg2: memref<32x1xi32, #tpu.memory_space<vmem>>, %arg3: memref<32x8xbf16, #tpu.memory_space<vmem>>, %arg4: memref<256x128xbf16, #tpu.memory_space<vmem>>, %arg5: memref<8x128xbf16, #tpu.memory_space<vmem>>, %arg6: memref<1x128xf32, #tpu.memory_space<vmem>>, %arg7: memref<128x128xbf16, #tpu.memory_space<vmem>>, %arg8: memref<1x128xf32, #tpu.memory_space<vmem>>, %arg9: memref<32x128xbf16, #tpu.memory_space<vmem>>) attributes {dimension_semantics = [#tpu.dimension_semantics<parallel>], iteration_bounds = array<i64: 1>, scalar_prefetch = 0 : i64, scratch_operands = 0 : i64, tpu.core_type = #tpu.core_type<tc>, window_params = [{transform_indices = @transform_0, window_bounds = array<i64: 32, 1>}, {transform_indices = @transform_1, window_bounds = array<i64: 32, 1>}, {transform_indices = @transform_2, window_bounds = array<i64: 32, 8>}, {pipeline_mode = #tpu.pipeline_mode<synchronous>, transform_indices = @transform_3, window_bounds = array<i64: 256, 128>}, {pipeline_mode = #tpu.pipeline_mode<synchronous>, transform_indices = @transform_4, window_bounds = array<i64: 8, 128>}, {pipeline_mode = #tpu.pipeline_mode<synchronous>, transform_indices = @transform_5, window_bounds = array<i64: 1, 128>}, {pipeline_mode = #tpu.pipeline_mode<synchronous>, transform_indices = @transform_6, window_bounds = array<i64: 128, 128>}, {pipeline_mode = #tpu.pipeline_mode<synchronous>, transform_indices = @transform_7, window_bounds = array<i64: 1, 128>}, {transform_indices = @transform_8, window_bounds = array<i64: 32, 128>}]} {
    %c0 = arith.constant 0 : index
    %c0_0 = arith.constant 0 : index
    %0 = vector.load %arg3[%c0, %c0_0] : memref<32x8xbf16, #tpu.memory_space<vmem>>, vector<32x8xbf16>
    %c0_1 = arith.constant 0 : index
    %c0_2 = arith.constant 0 : index
    %1 = vector.load %arg5[%c0_1, %c0_2] : memref<8x128xbf16, #tpu.memory_space<vmem>>, vector<8x128xbf16>
    %cst = arith.constant dense<0.000000e+00> : vector<32x128xf32>
    %2 = tpu.matmul %0, %1, %cst {dimension_numbers = #tpu.dot_dimension_numbers<[1], [0], [0], [1], [0, 0, 1, 1], [], []>} : vector<32x8xbf16>, vector<8x128xbf16>, vector<32x128xf32> -> vector<32x128xf32>
    %3 = tpu.iota {dimensions = array<i32: 1>} : vector<32x128xi32>
    %c32_i32 = arith.constant 32 : i32
    %4 = vector.broadcast %c32_i32 : i32 to vector<32x128xi32>
    %5 = arith.cmpi slt, %3, %4 : vector<32x128xi32>
    %c0_3 = arith.constant 0 : index
    %c0_4 = arith.constant 0 : index
    %6 = vector.load %arg6[%c0_3, %c0_4] : memref<1x128xf32, #tpu.memory_space<vmem>>, vector<1x128xf32>
    %7 = vector.broadcast %6 : vector<1x128xf32> to vector<32x128xf32>
    %8 = arith.addf %2, %7 : vector<32x128xf32>
    %cst_5 = arith.constant 0.000000e+00 : f32
    %9 = vector.broadcast %cst_5 : f32 to vector<32x128xf32>
    %10 = arith.subf %9, %8 : vector<32x128xf32>
    %11 = math.exp %10 : vector<32x128xf32>
    %cst_6 = arith.constant 1.000000e+00 : f32
    %12 = vector.broadcast %cst_6 : f32 to vector<32x128xf32>
    %13 = arith.addf %12, %11 : vector<32x128xf32>
    %14 = tpu.reciprocal %13 {approx = true} : vector<32x128xf32> -> vector<32x128xf32>
    %15 = arith.mulf %8, %14 : vector<32x128xf32>
    %16 = arith.select %5, %15, %2 : vector<32x128xi1>, vector<32x128xf32>
    %17 = arith.truncf %16 : vector<32x128xf32> to vector<32x128xbf16>
    %18 = tpu.iota {dimensions = array<i32: 1>} : vector<32x256xi32>
    %c0_7 = arith.constant 0 : index
    %c0_8 = arith.constant 0 : index
    %19 = vector.load %arg1[%c0_7, %c0_8] : memref<32x1xi32, #tpu.memory_space<vmem>>, vector<32x1xi32>
    %20 = vector.broadcast %19 : vector<32x1xi32> to vector<32x256xi32>
    %21 = arith.cmpi eq, %18, %20 : vector<32x256xi32>
    %c0_9 = arith.constant 0 : index
    %c0_10 = arith.constant 0 : index
    %22 = vector.load %arg2[%c0_9, %c0_10] : memref<32x1xi32, #tpu.memory_space<vmem>>, vector<32x1xi32>
    %c128_i32 = arith.constant 128 : i32
    %23 = vector.broadcast %c128_i32 : i32 to vector<32x1xi32>
    %24 = arith.addi %22, %23 : vector<32x1xi32>
    %25 = vector.broadcast %24 : vector<32x1xi32> to vector<32x256xi32>
    %26 = arith.cmpi eq, %18, %25 : vector<32x256xi32>
    %27 = arith.ori %21, %26 : vector<32x256xi1>
    %28 = arith.extui %27 : vector<32x256xi1> to vector<32x256xi32>
    %29 = arith.sitofp %28 : vector<32x256xi32> to vector<32x256xf32>
    %30 = arith.truncf %29 : vector<32x256xf32> to vector<32x256xbf16>
    %c0_11 = arith.constant 0 : index
    %c0_12 = arith.constant 0 : index
    %31 = vector.load %arg4[%c0_11, %c0_12] : memref<256x128xbf16, #tpu.memory_space<vmem>>, vector<256x128xbf16>
    %cst_13 = arith.constant dense<0.000000e+00> : vector<32x128xf32>
    %32 = tpu.matmul %30, %31, %cst_13 {dimension_numbers = #tpu.dot_dimension_numbers<[1], [0], [0], [1], [0, 0, 1, 1], [], []>} : vector<32x256xbf16>, vector<256x128xbf16>, vector<32x128xf32> -> vector<32x128xf32>
    %c0_14 = arith.constant 0 : index
    %c0_15 = arith.constant 0 : index
    %33 = vector.load %arg7[%c0_14, %c0_15] : memref<128x128xbf16, #tpu.memory_space<vmem>>, vector<128x128xbf16>
    %cst_16 = arith.constant dense<0.000000e+00> : vector<32x128xf32>
    %34 = tpu.matmul %17, %33, %cst_16 {dimension_numbers = #tpu.dot_dimension_numbers<[1], [0], [0], [1], [0, 0, 1, 1], [], []>} : vector<32x128xbf16>, vector<128x128xbf16>, vector<32x128xf32> -> vector<32x128xf32>
    %35 = arith.addf %32, %34 : vector<32x128xf32>
    %c0_17 = arith.constant 0 : index
    %c0_18 = arith.constant 0 : index
    %36 = vector.load %arg8[%c0_17, %c0_18] : memref<1x128xf32, #tpu.memory_space<vmem>>, vector<1x128xf32>
    %37 = vector.broadcast %36 : vector<1x128xf32> to vector<32x128xf32>
    %38 = arith.addf %35, %37 : vector<32x128xf32>
    %cst_19 = arith.constant 0.000000e+00 : f32
    %39 = vector.broadcast %cst_19 : f32 to vector<32x128xf32>
    %40 = arith.subf %39, %38 : vector<32x128xf32>
    %41 = math.exp %40 : vector<32x128xf32>
    %cst_20 = arith.constant 1.000000e+00 : f32
    %42 = vector.broadcast %cst_20 : f32 to vector<32x128xf32>
    %43 = arith.addf %42, %41 : vector<32x128xf32>
    %44 = tpu.reciprocal %43 {approx = true} : vector<32x128xf32> -> vector<32x128xf32>
    %45 = arith.mulf %38, %44 : vector<32x128xf32>
    %cst_21 = arith.constant 1.000000e+00 : f32
    %46 = vector.broadcast %cst_21 : f32 to vector<32x128xf32>
    %47 = arith.select %5, %46, %16 : vector<32x128xi1>, vector<32x128xf32>
    %48 = arith.mulf %45, %47 : vector<32x128xf32>
    %49 = arith.truncf %48 : vector<32x128xf32> to vector<32x128xbf16>
    %c0_22 = arith.constant 0 : index
    %c0_23 = arith.constant 0 : index
    %50 = vector.load %arg9[%c0_22, %c0_23] : memref<32x128xbf16, #tpu.memory_space<vmem>>, vector<32x128xbf16>
    tpu.vector_store %arg9[%c0_22, %c0_23], %49 {strides = array<i32>} : memref<32x128xbf16, #tpu.memory_space<vmem>>, vector<32x128xbf16>,
    return
  }
  func.func @transform_0(%arg0: i32) -> (i32, i32) {
    %c0_i32 = arith.constant 0 : i32
    %c0_i32_0 = arith.constant 0 : i32
    return %arg0, %c0_i32 : i32, i32
  }
  func.func @transform_1(%arg0: i32) -> (i32, i32) {
    %c0_i32 = arith.constant 0 : i32
    %c0_i32_0 = arith.constant 0 : i32
    return %arg0, %c0_i32 : i32, i32
  }
  func.func @transform_2(%arg0: i32) -> (i32, i32) {
    %c0_i32 = arith.constant 0 : i32
    %c0_i32_0 = arith.constant 0 : i32
    return %arg0, %c0_i32 : i32, i32
  }
  func.func @transform_3(%arg0: i32) -> (i32, i32) {
    %c0_i32 = arith.constant 0 : i32
    %c0_i32_0 = arith.constant 0 : i32
    %c0_i32_1 = arith.constant 0 : i32
    return %c0_i32, %c0_i32_0 : i32, i32
  }
  func.func @transform_4(%arg0: i32) -> (i32, i32) {
    %c0_i32 = arith.constant 0 : i32
    %c0_i32_0 = arith.constant 0 : i32
    %c0_i32_1 = arith.constant 0 : i32
    return %c0_i32, %c0_i32_0 : i32, i32
  }
  func.func @transform_5(%arg0: i32) -> (i32, i32) {
    %c0_i32 = arith.constant 0 : i32
    %c0_i32_0 = arith.constant 0 : i32
    %c0_i32_1 = arith.constant 0 : i32
    return %c0_i32, %c0_i32_0 : i32, i32
  }
  func.func @transform_6(%arg0: i32) -> (i32, i32) {
    %c0_i32 = arith.constant 0 : i32
    %c0_i32_0 = arith.constant 0 : i32
    %c0_i32_1 = arith.constant 0 : i32
    return %c0_i32, %c0_i32_0 : i32, i32
  }
  func.func @transform_7(%arg0: i32) -> (i32, i32) {
    %c0_i32 = arith.constant 0 : i32
    %c0_i32_0 = arith.constant 0 : i32
    %c0_i32_1 = arith.constant 0 : i32
    return %c0_i32, %c0_i32_0 : i32, i32
  }
  func.func @transform_8(%arg0: i32) -> (i32, i32) {
    %c0_i32 = arith.constant 0 : i32
    %c0_i32_0 = arith.constant 0 : i32
    return %arg0, %c0_i32 : i32, i32
  }
}

</mosaic_0001>

<llo_original>
// kernel: tpu_custom_call.1
$region0: #{tpu_custom_call.1}
  #allocation0 [shape = 'u32[]', space=smem, size = 0x4, offset = 0x4, fixed_abs, tag = 'smem constant byte address 0x4 - core index']
  #allocation1 [shape = 'u32[144,128]{1,0:T(1,128)}', space=vmem, size = 0x12000, scoped, tag = 'internal scratch']
  %s0 = inlined_call_operand.hbm [shape: s32[32,1], index: 0, kind: input, shape index: {}]
  %s1 = inlined_call_operand.hbm [shape: s32[32,1], index: 1, kind: input, shape index: {}]
  %s2 = inlined_call_operand.hbm [shape: bf16[32,8], index: 2, kind: input, shape index: {}]
  %s3 = inlined_call_operand.hbm [shape: bf16[256,128], index: 3, kind: input, shape index: {}]
  %s4 = inlined_call_operand.hbm [shape: bf16[8,128], index: 4, kind: input, shape index: {}]
  %s5 = inlined_call_operand.hbm [shape: f32[1,128], index: 5, kind: input, shape index: {}]
  %s6 = inlined_call_operand.hbm [shape: bf16[128,128], index: 6, kind: input, shape index: {}]
  %s7 = inlined_call_operand.hbm [shape: f32[1,128], index: 7, kind: input, shape index: {}]
  %s8 = inlined_call_operand.hbm [shape: bf16[32,128], index: 8, kind: output, shape index: {}]
  %s9 = sld [smem:[#allocation0]]
  $region74: #{tpu_custom_call.1} parent=0
    _
  %s11 = ssub.s32 1, %s9
  %s12 = scalar_select 0, %s11, %s9
  $region1: #{tpu_custom_call.1} parent=0
    #allocation2 [shape = 'u8[16384]{0}', space=vmem, size = 0x4000, scoped, tag = 'input window, operand 0, single buffered']
    #allocation3 [shape = 's32[1]{0}', space=sflag, size = 0x4, scoped, tag = 'scoped memory for tpu_custom_call.1']
    #allocation4 [shape = 's32[1]{0}', space=sflag, size = 0x4, scoped, tag = 'scoped memory for tpu_custom_call.1']
    #allocation5 [shape = 'u8[16384]{0}', space=vmem, size = 0x4000, scoped, tag = 'input window, operand 1, single buffered']
    #allocation6 [shape = 's32[1]{0}', space=sflag, size = 0x4, scoped, tag = 'scoped memory for tpu_custom_call.1']
    #allocation7 [shape = 'u8[8192]{0}', space=vmem, size = 0x2000, scoped, tag = 'input window, operand 2, single buffered']
    #allocation8 [shape = 'u8[65536]{0}', space=vmem, size = 0x10000, scoped, tag = 'input window, operand 3, single buffered']
    #allocation9 [shape = 's32[1]{0}', space=sflag, size = 0x4, scoped, tag = 'scoped memory for tpu_custom_call.1']
    #allocation10 [shape = 'u8[2048]{0}', space=vmem, size = 0x800, scoped, tag = 'input window, operand 4, single buffered']
    #allocation11 [shape = 'u8[512]{0}', space=vmem, size = 0x400, scoped, tag = 'input window, operand 5, single buffered']
    #allocation12 [shape = 's32[1]{0}', space=sflag, size = 0x4, scoped, tag = 'scoped memory for tpu_custom_call.1']
    #allocation13 [shape = 'u8[32768]{0}', space=vmem, size = 0x8000, scoped, tag = 'input window, operand 6, single buffered']
    #allocation14 [shape = 'u8[512]{0}', space=vmem, size = 0x400, scoped, tag = 'input window, operand 7, single buffered']
    #allocation15 [shape = 's32[1]{0}', space=sflag, size = 0x4, scoped, tag = 'scoped memory for tpu_custom_call.1']
    #allocation16 [shape = 'u8[8192]{0}', space=vmem, size = 0x2000, scoped, tag = 'output window, operand 0, single buffered']
    %13 = vsyncpa [#allocation3], 0
    %14 = vsyncpa [#allocation6], 0
    %15 = vsyncpa [#allocation9], 0
    %16 = vsyncpa [#allocation12], 0
    %17 = vsyncpa [#allocation15], 0
    %18 = vsyncpa [#allocation4], 0
    // Predicated region
    $region2: #{tpu_custom_call.1} parent=1 // pred_check
      _
    $region3: #{tpu_custom_call.1} parent=1 // pred_check_branch
      %20 = sbr.rel (0) target = $region5
    $region4: #{tpu_custom_call.1} parent=1 // pred_region
      %s22 = ssub.s32 512, 512
      %23 = vsyncadd [#allocation3], %s22
      %s24 = sshll.u32 [#allocation2], 4
      %s25 = int_to_ptr.vmem [resolvable:$true] %s24
      %30 = dma.hbm_to_vmem [thread:$0]  %s0, 512, %s25, [#allocation3], 128, 128, 8
    $region5: #{tpu_custom_call.1} parent=1 // pred_fallthru
      _
    // Predicated region
    $region6: #{tpu_custom_call.1} parent=1 // pred_check
      _
    $region7: #{tpu_custom_call.1} parent=1 // pred_check_branch
      %32 = sbr.rel (0) target = $region9
    $region8: #{tpu_custom_call.1} parent=1 // pred_region
      %s34 = ssub.s32 512, 512
      %35 = vsyncadd [#allocation6], %s34
      %s36 = sshll.u32 [#allocation5], 4
      %s37 = int_to_ptr.vmem [resolvable:$true] %s36
      %42 = dma.hbm_to_vmem [thread:$0]  %s1, 512, %s37, [#allocation6], 128, 128, 8
    $region9: #{tpu_custom_call.1} parent=1 // pred_fallthru
      _
    // Predicated region
    $region10: #{tpu_custom_call.1} parent=1 // pred_check
      _
    $region11: #{tpu_custom_call.1} parent=1 // pred_check_branch
      %44 = sbr.rel (0) target = $region13
    $region12: #{tpu_custom_call.1} parent=1 // pred_region
      %s46 = ssub.s32 256, 256
      %47 = vsyncadd [#allocation6], %s46
      %s48 = sshll.u32 [#allocation7], 4
      %s49 = int_to_ptr.vmem [resolvable:$true] %s48
      %54 = dma.hbm_to_vmem [thread:$0]  %s2, 256, %s49, [#allocation6], 64, 64, 4
    $region13: #{tpu_custom_call.1} parent=1 // pred_fallthru
      _
    // Predicated region
    $region14: #{tpu_custom_call.1} parent=1 // pred_check
      _
    $region15: #{tpu_custom_call.1} parent=1 // pred_check_branch
      %56 = sbr.rel (0) target = $region17
    $region16: #{tpu_custom_call.1} parent=1 // pred_region
      %s58 = ssub.s32 2048, 2048
      %59 = vsyncadd [#allocation9], %s58
      %s60 = sshll.u32 [#allocation8], 4
      %s61 = int_to_ptr.vmem [resolvable:$true] %s60
      %66 = dma.hbm_to_vmem [thread:$0]  %s3, 2048, %s61, [#allocation9], 64, 64, 4
    $region17: #{tpu_custom_call.1} parent=1 // pred_fallthru
      _
    // Predicated region
    $region18: #{tpu_custom_call.1} parent=1 // pred_check
      _
    $region19: #{tpu_custom_call.1} parent=1 // pred_check_branch
      %68 = sbr.rel (0) target = $region21
    $region20: #{tpu_custom_call.1} parent=1 // pred_region
      %s70 = ssub.s32 64, 64
      %71 = vsyncadd [#allocation9], %s70
      %s73 = sshll.u32 [#allocation10], 4
      %s74 = int_to_ptr.vmem [resolvable:$true] %s73
      %76 = dma.hbm_to_vmem [thread:$0]  %s4, 64, %s74, [#allocation9]
    $region21: #{tpu_custom_call.1} parent=1 // pred_fallthru
      _
    // Predicated region
    $region22: #{tpu_custom_call.1} parent=1 // pred_check
      _
    $region23: #{tpu_custom_call.1} parent=1 // pred_check_branch
      %78 = sbr.rel (0) target = $region25
    $region24: #{tpu_custom_call.1} parent=1 // pred_region
      %s80 = ssub.s32 16, 16
      %81 = vsyncadd [#allocation12], %s80
      %s83 = sshll.u32 [#allocation11], 4
      %s84 = int_to_ptr.vmem [resolvable:$true] %s83
      %86 = dma.hbm_to_vmem [thread:$0]  %s5, 16, %s84, [#allocation12]
    $region25: #{tpu_custom_call.1} parent=1 // pred_fallthru
      _
    // Predicated region
    $region26: #{tpu_custom_call.1} parent=1 // pred_check
      _
    $region27: #{tpu_custom_call.1} parent=1 // pred_check_branch
      %88 = sbr.rel (0) target = $region29
    $region28: #{tpu_custom_call.1} parent=1 // pred_region
      %s90 = ssub.s32 1024, 1024
      %91 = vsyncadd [#allocation12], %s90
      %s92 = sshll.u32 [#allocation13], 4
      %s93 = int_to_ptr.vmem [resolvable:$true] %s92
      %98 = dma.hbm_to_vmem [thread:$0]  %s6, 1024, %s93, [#allocation12], 64, 64, 4
    $region29: #{tpu_custom_call.1} parent=1 // pred_fallthru
      _
    // Predicated region
    $region30: #{tpu_custom_call.1} parent=1 // pred_check
      _
    $region31: #{tpu_custom_call.1} parent=1 // pred_check_branch
      %100 = sbr.rel (0) target = $region33
    $region32: #{tpu_custom_call.1} parent=1 // pred_region
      %s102 = ssub.s32 16, 16
      %103 = vsyncadd [#allocation15], %s102
      %s105 = sshll.u32 [#allocation14], 4
      %s106 = int_to_ptr.vmem [resolvable:$true] %s105
      %108 = dma.hbm_to_vmem [thread:$0]  %s7, 16, %s106, [#allocation15]
    $region33: #{tpu_custom_call.1} parent=1 // pred_fallthru
      _
    // Predicated region
    $region34: #{tpu_custom_call.1} parent=1 // pred_check
      _
    $region35: #{tpu_custom_call.1} parent=1 // pred_check_branch
      %110 = sbr.rel (0) target = $region37
    $region36: #{tpu_custom_call.1} parent=1 // pred_region
      %111 = dma.done [#allocation3], 512
    $region37: #{tpu_custom_call.1} parent=1 // pred_fallthru
      _
    // Predicated region
    $region38: #{tpu_custom_call.1} parent=1 // pred_check
      _
    $region39: #{tpu_custom_call.1} parent=1 // pred_check_branch
      %113 = sbr.rel (0) target = $region41
    $region40: #{tpu_custom_call.1} parent=1 // pred_region
      %114 = dma.done [#allocation6], 512
    $region41: #{tpu_custom_call.1} parent=1 // pred_fallthru
      _
    // Predicated region
    $region42: #{tpu_custom_call.1} parent=1 // pred_check
      _
    $region43: #{tpu_custom_call.1} parent=1 // pred_check_branch
      %116 = sbr.rel (0) target = $region45
    $region44: #{tpu_custom_call.1} parent=1 // pred_region
      %117 = dma.done [#allocation6], 256
    $region45: #{tpu_custom_call.1} parent=1 // pred_fallthru
      _
    // Predicated region
    $region46: #{tpu_custom_call.1} parent=1 // pred_check
      _
    $region47: #{tpu_custom_call.1} parent=1 // pred_check_branch
      %119 = sbr.rel (0) target = $region49
    $region48: #{tpu_custom_call.1} parent=1 // pred_region
      %120 = dma.done [#allocation9], 2048
    $region49: #{tpu_custom_call.1} parent=1 // pred_fallthru
      _
    // Predicated region
    $region50: #{tpu_custom_call.1} parent=1 // pred_check
      _
    $region51: #{tpu_custom_call.1} parent=1 // pred_check_branch
      %122 = sbr.rel (0) target = $region53
    $region52: #{tpu_custom_call.1} parent=1 // pred_region
      %123 = dma.done [#allocation9], 64
    $region53: #{tpu_custom_call.1} parent=1 // pred_fallthru
      _
    // Predicated region
    $region54: #{tpu_custom_call.1} parent=1 // pred_check
      _
    $region55: #{tpu_custom_call.1} parent=1 // pred_check_branch
      %125 = sbr.rel (0) target = $region57
    $region56: #{tpu_custom_call.1} parent=1 // pred_region
      %126 = dma.done [#allocation12], 16
    $region57: #{tpu_custom_call.1} parent=1 // pred_fallthru
      _
    // Predicated region
    $region58: #{tpu_custom_call.1} parent=1 // pred_check
      _
    $region59: #{tpu_custom_call.1} parent=1 // pred_check_branch
      %128 = sbr.rel (0) target = $region61
    $region60: #{tpu_custom_call.1} parent=1 // pred_region
      %129 = dma.done [#allocation12], 1024
    $region61: #{tpu_custom_call.1} parent=1 // pred_fallthru
      _
    // Predicated region
    $region62: #{tpu_custom_call.1} parent=1 // pred_check
      _
    $region63: #{tpu_custom_call.1} parent=1 // pred_check_branch
      %131 = sbr.rel (0) target = $region65
    $region64: #{tpu_custom_call.1} parent=1 // pred_region
      %132 = dma.done [#allocation15], 16
    $region65: #{tpu_custom_call.1} parent=1 // pred_fallthru
      _
    %v134 = vld [vmem:[#allocation7] sm:$0xf]
    %v135 = vld [vmem:[#allocation7 + $0x4] sm:$0xf]
    %v136 = vld [vmem:[#allocation7 + $0x8] sm:$0xf]
    %v137 = vld [vmem:[#allocation7 + $0xc] sm:$0xf]
    %v138 = vld [vmem:[#allocation10] sm:$0xf]
    %v143 = vunpack.c.l.b16 %v134
    %v144 = vunpack.c.l.b16 %v135
    %v145 = vunpack.c.l.b16 %v136
    %v146 = vunpack.c.l.b16 %v137
    %v147 = vpack.c.b16 %v144, %v143
    %v148 = vpack.c.b16 %v146, %v145
    %vm149 = vcmask 64512
    %v151 = vsel %vm149, %v147, 0
    %v154 = vsel %vm149, %v148, 0
    %vm156 = vcmask 1043456
    %v158 = vsel %vm156, %v138, 0
    %160 = vmatprep.subr.bf16.mxu0 0
    %161 = vmatpush1.bf16.msra.mxu0 %v158
    %162 = vmatprep.subr.bf16.mxu0 0
    %163 = vmatpush1.bf16.msra.mxu0 0
    %164 = vmatprep.subr.bf16.mxu0 0
    %165 = vmatpush1.bf16.msra.mxu0 0
    %166 = vmatprep.subr.bf16.mxu0 0
    %167 = vmatpush1.bf16.msra.mxu0 0
    %168 = vmatprep.subr.bf16.mxu0 0
    %169 = vmatpush1.bf16.msra.mxu0 0
    %170 = vmatprep.subr.bf16.mxu0 0
    %171 = vmatpush1.bf16.msra.mxu0 0
    %172 = vmatprep.subr.bf16.mxu0 0
    %173 = vmatpush1.bf16.msra.mxu0 0
    %174 = vmatprep.subr.bf16.mxu0 0
    %175 = vmatpush1.bf16.msra.mxu0 0
    %176 = vmatprep.subr.bf16.mxu0 0
    %177 = vmatpush1.bf16.msra.mxu0 0
    %178 = vmatprep.subr.bf16.mxu0 0
    %179 = vmatpush1.bf16.msra.mxu0 0
    %180 = vmatprep.subr.bf16.mxu0 0
    %181 = vmatpush1.bf16.msra.mxu0 0
    %182 = vmatprep.subr.bf16.mxu0 0
    %183 = vmatpush1.bf16.msra.mxu0 0
    %184 = vmatprep.subr.bf16.mxu0 0
    %185 = vmatpush1.bf16.msra.mxu0 0
    %186 = vmatprep.subr.bf16.mxu0 0
    %187 = vmatpush1.bf16.msra.mxu0 0
    %188 = vmatprep.subr.bf16.mxu0 0
    %189 = vmatpush1.bf16.msra.mxu0 0
    %190 = vmatprep.subr.bf16.mxu0 0
    %191 = vmatpush1.bf16.msra.mxu0 0
    %192 = vmatprep.mubr.bf16.mxu0 0
    %193 = vmatmul.mubr.bf16.gmra.mrb[0].mxu0 %v151
    %v194 = vpop.f32.mrb[0].mxu0
    %v195 = vadd.f32 0.0, %v194
    %v196 = vpop.f32.mrb[0].mxu0
    %v197 = vpop.f32.mrb[0].mxu0
    %v198 = vadd.f32 0.0, %v197
    %v199 = vpop.f32.mrb[0].mxu0
    %200 = vmatprep.mubr.bf16.mxu0 0
    %201 = vmatmul.mubr.bf16.gmra.mrb[0].mxu0 %v154
    %v202 = vpop.f32.mrb[0].mxu0
    %v203 = vadd.f32 0.0, %v202
    %v204 = vpop.f32.mrb[0].mxu0
    %v205 = vpop.f32.mrb[0].mxu0
    %v206 = vadd.f32 0.0, %v205
    %v207 = vpop.f32.mrb[0].mxu0
    %208 = vdwg.mxu0
    %v209 = vlaneseq
    %v210 = vand.u32 %v209, 127
    %vm211 = vcmp.lt.s32.totalorder %v210, 32
    %v212 = vld [vmem:[#allocation11] sm:$0x1]
    %v214 = vlaneseq
    %v215 = vshrl.u32 %v214, 7
    %v216 = vsub.s32 0, %v215
    %v217 = vrot.slane %v212, %v216
    %v219 = vadd.f32 %v195, %v217
    %v220 = vadd.f32 %v198, %v217
    %v221 = vadd.f32 %v203, %v217
    %v222 = vadd.f32 %v206, %v217
    %v223 = vsub.f32 0.0, %v219
    %v224 = vsub.f32 0.0, %v220
    %v225 = vsub.f32 0.0, %v221
    %v226 = vsub.f32 0.0, %v222
    %v227 = vmul.f32 %v223, 1.442695
    %v228 = vpow.pop %v227
    %v229 = vmul.f32 %v224, 1.442695
    %v230 = vpow.pop %v229
    %v231 = vmul.f32 %v225, 1.442695
    %v232 = vpow.pop %v231
    %v233 = vmul.f32 %v226, 1.442695
    %v234 = vpow.pop %v233
    %v235 = vadd.f32 %v228, 1.0
    %v236 = vadd.f32 %v230, 1.0
    %v237 = vadd.f32 %v232, 1.0
    %v238 = vadd.f32 %v234, 1.0
    %v239 = vrcp.pop %v235
    %v240 = vrcp.pop %v236
    %v241 = vrcp.pop %v237
    %v242 = vrcp.pop %v238
    %v243 = vmul.f32 %v219, %v239
    %v244 = vmul.f32 %v220, %v240
    %v245 = vmul.f32 %v221, %v241
    %v246 = vmul.f32 %v222, %v242
    %v247 = vsel %vm211, %v243, %v195
    %v248 = vsel %vm211, %v244, %v198
    %v249 = vsel %vm211, %v245, %v203
    %v250 = vsel %vm211, %v246, %v206
    %v251 = vpack.c.bf16 %v248, %v247
    %v252 = vpack.c.bf16 %v250, %v249
    %v253 = vadd.s32 %v210, 128
    %v254 = vld [vmem:[#allocation2] sm:$0xff]
    %v255 = vld [vmem:[#allocation2 + $0x8] sm:$0xff]
    %v256 = vld [vmem:[#allocation2 + $0x10] sm:$0xff]
    %v257 = vld [vmem:[#allocation2 + $0x18] sm:$0xff]
    %258 = vset.pattern.permute.xlu0 0
    %259 = vperm.xlu0 %258, %v254
    %v260 = vpop.permute.xlu0 %259
    %261 = vset.pattern.permute.xlu0 0
    %262 = vperm.xlu0 %261, %v255
    %v263 = vpop.permute.xlu0 %262
    %264 = vset.pattern.permute.xlu0 0
    %265 = vperm.xlu0 %264, %v256
    %v266 = vpop.permute.xlu0 %265
    %267 = vset.pattern.permute.xlu0 0
    %268 = vperm.xlu0 %267, %v257
    %v269 = vpop.permute.xlu0 %268
    %vm270 = vcmp.eq.s32.totalorder %v210, %v260
    %vm271 = vcmp.eq.s32.totalorder %v253, %v260
    %vm272 = vcmp.eq.s32.totalorder %v210, %v263
    %vm273 = vcmp.eq.s32.totalorder %v253, %v263
    %vm274 = vcmp.eq.s32.totalorder %v210, %v266
    %vm275 = vcmp.eq.s32.totalorder %v253, %v266
    %vm276 = vcmp.eq.s32.totalorder %v210, %v269
    %vm277 = vcmp.eq.s32.totalorder %v253, %v269
    %v278 = vld [vmem:[#allocation5] sm:$0xff]
    %v279 = vld [vmem:[#allocation5 + $0x8] sm:$0xff]
    %v280 = vld [vmem:[#allocation5 + $0x10] sm:$0xff]
    %v281 = vld [vmem:[#allocation5 + $0x18] sm:$0xff]
    %v282 = vadd.s32 %v278, 128
    %v283 = vadd.s32 %v279, 128
    %v284 = vadd.s32 %v280, 128
    %v285 = vadd.s32 %v281, 128
    %286 = vset.pattern.permute.xlu0 0
    %287 = vperm.xlu0 %286, %v282
    %v288 = vpop.permute.xlu0 %287
    %289 = vset.pattern.permute.xlu0 0
    %290 = vperm.xlu0 %289, %v283
    %v291 = vpop.permute.xlu0 %290
    %292 = vset.pattern.permute.xlu0 0
    %293 = vperm.xlu0 %292, %v284
    %v294 = vpop.permute.xlu0 %293
    %295 = vset.pattern.permute.xlu0 0
    %296 = vperm.xlu0 %295, %v285
    %v297 = vpop.permute.xlu0 %296
    %vm298 = vcmp.eq.s32.totalorder %v210, %v288
    %vm299 = vcmp.eq.s32.totalorder %v253, %v288
    %vm300 = vcmp.eq.s32.totalorder %v210, %v291
    %vm301 = vcmp.eq.s32.totalorder %v253, %v291
    %vm302 = vcmp.eq.s32.totalorder %v210, %v294
    %vm303 = vcmp.eq.s32.totalorder %v253, %v294
    %vm304 = vcmp.eq.s32.totalorder %v210, %v297
    %vm305 = vcmp.eq.s32.totalorder %v253, %v297
    %vm306 = vmor %vm270, %vm298
    %vm307 = vmor %vm271, %vm299
    %vm308 = vmor %vm272, %vm300
    %vm309 = vmor %vm273, %vm301
    %vm310 = vmor %vm274, %vm302
    %vm311 = vmor %vm275, %vm303
    %vm312 = vmor %vm276, %vm304
    %vm313 = vmor %vm277, %vm305
    %v314 = vsel %vm306, 1, 0
    %v315 = vsel %vm307, 1, 0
    %v316 = vsel %vm308, 1, 0
    %v317 = vsel %vm309, 1, 0
    %v318 = vsel %vm310, 1, 0
    %v319 = vsel %vm311, 1, 0
    %v320 = vsel %vm312, 1, 0
    %v321 = vsel %vm313, 1, 0
    %v322 = vcvt.s32.f32 %v314
    %v323 = vcvt.s32.f32 %v315
    %v324 = vcvt.s32.f32 %v316
    %v325 = vcvt.s32.f32 %v317
    %v326 = vcvt.s32.f32 %v318
    %v327 = vcvt.s32.f32 %v319
    %v328 = vcvt.s32.f32 %v320
    %v329 = vcvt.s32.f32 %v321
    %v330 = vpack.c.bf16 %v324, %v322
    %v331 = vpack.c.bf16 %v325, %v323
    %v332 = vpack.c.bf16 %v328, %v326
    %v333 = vpack.c.bf16 %v329, %v327
    %v334 = vld [vmem:[#allocation8] sm:$0xf]
    %v335 = vld [vmem:[#allocation8 + $0x4] sm:$0xf]
    %v336 = vld [vmem:[#allocation8 + $0x8] sm:$0xf]
    %v337 = vld [vmem:[#allocation8 + $0xc] sm:$0xf]
    %v338 = vld [vmem:[#allocation8 + $0x10] sm:$0xf]
    %v339 = vld [vmem:[#allocation8 + $0x14] sm:$0xf]
    %v340 = vld [vmem:[#allocation8 + $0x18] sm:$0xf]
    %v341 = vld [vmem:[#allocation8 + $0x1c] sm:$0xf]
    %v342 = vld [vmem:[#allocation8 + $0x20] sm:$0xf]
    %v343 = vld [vmem:[#allocation8 + $0x24] sm:$0xf]
    %v344 = vld [vmem:[#allocation8 + $0x28] sm:$0xf]
    %v345 = vld [vmem:[#allocation8 + $0x2c] sm:$0xf]
    %v346 = vld [vmem:[#allocation8 + $0x30] sm:$0xf]
    %v347 = vld [vmem:[#allocation8 + $0x34] sm:$0xf]
    %v348 = vld [vmem:[#allocation8 + $0x38] sm:$0xf]
    %v349 = vld [vmem:[#allocation8 + $0x3c] sm:$0xf]
    %v350 = vld [vmem:[#allocation8 + $0x40] sm:$0xf]
    %v351 = vld [vmem:[#allocation8 + $0x44] sm:$0xf]
    %v352 = vld [vmem:[#allocation8 + $0x48] sm:$0xf]
    %v353 = vld [vmem:[#allocation8 + $0x4c] sm:$0xf]
    %v354 = vld [vmem:[#allocation8 + $0x50] sm:$0xf]
    %v355 = vld [vmem:[#allocation8 + $0x54] sm:$0xf]
    %v356 = vld [vmem:[#allocation8 + $0x58] sm:$0xf]
    %v357 = vld [vmem:[#allocation8 + $0x5c] sm:$0xf]
    %v358 = vld [vmem:[#allocation8 + $0x60] sm:$0xf]
    %v359 = vld [vmem:[#allocation8 + $0x64] sm:$0xf]
    %v360 = vld [vmem:[#allocation8 + $0x68] sm:$0xf]
    %v361 = vld [vmem:[#allocation8 + $0x6c] sm:$0xf]
    %v362 = vld [vmem:[#allocation8 + $0x70] sm:$0xf]
    %v363 = vld [vmem:[#allocation8 + $0x74] sm:$0xf]
    %v364 = vld [vmem:[#allocation8 + $0x78] sm:$0xf]
    %v365 = vld [vmem:[#allocation8 + $0x7c] sm:$0xf]
    %v366 = vld [vmem:[#allocation13] sm:$0xf]
    %v367 = vld [vmem:[#allocation13 + $0x4] sm:$0xf]
    %v368 = vld [vmem:[#allocation13 + $0x8] sm:$0xf]
    %v369 = vld [vmem:[#allocation13 + $0xc] sm:$0xf]
    %v370 = vld [vmem:[#allocation13 + $0x10] sm:$0xf]
    %v371 = vld [vmem:[#allocation13 + $0x14] sm:$0xf]
    %v372 = vld [vmem:[#allocation13 + $0x18] sm:$0xf]
    %v373 = vld [vmem:[#allocation13 + $0x1c] sm:$0xf]
    %v374 = vld [vmem:[#allocation13 + $0x20] sm:$0xf]
    %v375 = vld [vmem:[#allocation13 + $0x24] sm:$0xf]
    %v376 = vld [vmem:[#allocation13 + $0x28] sm:$0xf]
    %v377 = vld [vmem:[#allocation13 + $0x2c] sm:$0xf]
    %v378 = vld [vmem:[#allocation13 + $0x30] sm:$0xf]
    %v379 = vld [vmem:[#allocation13 + $0x34] sm:$0xf]
    %v380 = vld [vmem:[#allocation13 + $0x38] sm:$0xf]
    %v381 = vld [vmem:[#allocation13 + $0x3c] sm:$0xf]
    %v398 = vunpack.c.l.b16 %v366
    %v399 = vunpack.c.l.b16 %v367
    %v400 = vunpack.c.l.b16 %v368
    %v401 = vunpack.c.l.b16 %v369
    %v402 = vunpack.c.l.b16 %v370
    %v403 = vunpack.c.l.b16 %v371
    %v404 = vunpack.c.l.b16 %v372
    %v405 = vunpack.c.l.b16 %v373
    %v406 = vunpack.c.l.b16 %v374
    %v407 = vunpack.c.l.b16 %v375
    %v408 = vunpack.c.l.b16 %v376
    %v409 = vunpack.c.l.b16 %v377
    %v410 = vunpack.c.l.b16 %v378
    %v411 = vunpack.c.l.b16 %v379
    %v412 = vunpack.c.l.b16 %v380
    %v413 = vunpack.c.l.b16 %v381
    %v414 = vpack.c.b16 %v399, %v398
    %v415 = vpack.c.b16 %v401, %v400
    %v416 = vpack.c.b16 %v403, %v402
    %v417 = vpack.c.b16 %v405, %v404
    %v418 = vpack.c.b16 %v407, %v406
    %v419 = vpack.c.b16 %v409, %v408
    %v420 = vpack.c.b16 %v411, %v410
    %v421 = vpack.c.b16 %v413, %v412
    %430 = vmatprep.subr.bf16.mxu0 0
    %431 = vmatpush1.bf16.msra.mxu0 %v414
    %432 = vmatprep.subr.bf16.mxu0 0
    %433 = vmatpush1.bf16.msra.mxu0 %v415
    %434 = vmatprep.subr.bf16.mxu0 0
    %435 = vmatpush1.bf16.msra.mxu0 %v416
    %436 = vmatprep.subr.bf16.mxu0 0
    %437 = vmatpush1.bf16.msra.mxu0 %v417
    %438 = vmatprep.subr.bf16.mxu0 0
    %439 = vmatpush1.bf16.msra.mxu0 %v418
    %440 = vmatprep.subr.bf16.mxu0 0
    %441 = vmatpush1.bf16.msra.mxu0 %v419
    %442 = vmatprep.subr.bf16.mxu0 0
    %443 = vmatpush1.bf16.msra.mxu0 %v420
    %444 = vmatprep.subr.bf16.mxu0 0
    %445 = vmatpush1.bf16.msra.mxu0 %v421
    %446 = vmatprep.subr.bf16.mxu0 0
    %447 = vmatpush1.bf16.msra.mxu0 0
    %448 = vmatprep.subr.bf16.mxu0 0
    %449 = vmatpush1.bf16.msra.mxu0 0
    %450 = vmatprep.subr.bf16.mxu0 0
    %451 = vmatpush1.bf16.msra.mxu0 0
    %452 = vmatprep.subr.bf16.mxu0 0
    %453 = vmatpush1.bf16.msra.mxu0 0
    %454 = vmatprep.subr.bf16.mxu0 0
    %455 = vmatpush1.bf16.msra.mxu0 0
    %456 = vmatprep.subr.bf16.mxu0 0
    %457 = vmatpush1.bf16.msra.mxu0 0
    %458 = vmatprep.subr.bf16.mxu0 0
    %459 = vmatpush1.bf16.msra.mxu0 0
    %460 = vmatprep.subr.bf16.mxu0 0
    %461 = vmatpush1.bf16.msra.mxu0 0
    %462 = vmatprep.mubr.bf16.mxu0 0
    %463 = vmatmul.mubr.bf16.gmra.mrb[0].mxu0 %v251
    %v464 = vpop.f32.mrb[0].mxu0
    %v465 = vadd.f32 0.0, %v464
    %v466 = vpop.f32.mrb[0].mxu0
    %v467 = vpop.f32.mrb[0].mxu0
    %v468 = vadd.f32 0.0, %v467
    %v469 = vpop.f32.mrb[0].mxu0
    %470 = vmatprep.mubr.bf16.mxu0 0
    %471 = vmatmul.mubr.bf16.gmra.mrb[0].mxu0 %v252
    %v472 = vpop.f32.mrb[0].mxu0
    %v473 = vadd.f32 0.0, %v472
    %v474 = vpop.f32.mrb[0].mxu0
    %v475 = vpop.f32.mrb[0].mxu0
    %v476 = vadd.f32 0.0, %v475
    %v477 = vpop.f32.mrb[0].mxu0
    %478 = vdwg.mxu0
    %v511 = vunpack.c.l.b16 %v334
    %v512 = vunpack.c.l.b16 %v335
    %v513 = vunpack.c.l.b16 %v336
    %v514 = vunpack.c.l.b16 %v337
    %v515 = vunpack.c.l.b16 %v338
    %v516 = vunpack.c.l.b16 %v339
    %v517 = vunpack.c.l.b16 %v340
    %v518 = vunpack.c.l.b16 %v341
    %v519 = vunpack.c.l.b16 %v342
    %v520 = vunpack.c.l.b16 %v343
    %v521 = vunpack.c.l.b16 %v344
    %v522 = vunpack.c.l.b16 %v345
    %v523 = vunpack.c.l.b16 %v346
    %v524 = vunpack.c.l.b16 %v347
    %v525 = vunpack.c.l.b16 %v348
    %v526 = vunpack.c.l.b16 %v349
    %v527 = vunpack.c.l.b16 %v350
    %v528 = vunpack.c.l.b16 %v351
    %v529 = vunpack.c.l.b16 %v352
    %v530 = vunpack.c.l.b16 %v353
    %v531 = vunpack.c.l.b16 %v354
    %v532 = vunpack.c.l.b16 %v355
    %v533 = vunpack.c.l.b16 %v356
    %v534 = vunpack.c.l.b16 %v357
    %v535 = vunpack.c.l.b16 %v358
    %v536 = vunpack.c.l.b16 %v359
    %v537 = vunpack.c.l.b16 %v360
    %v538 = vunpack.c.l.b16 %v361
    %v539 = vunpack.c.l.b16 %v362
    %v540 = vunpack.c.l.b16 %v363
    %v541 = vunpack.c.l.b16 %v364
    %v542 = vunpack.c.l.b16 %v365
    %v543 = vpack.c.b16 %v512, %v511
    %v544 = vpack.c.b16 %v514, %v513
    %v545 = vpack.c.b16 %v516, %v515
    %v546 = vpack.c.b16 %v518, %v517
    %v547 = vpack.c.b16 %v520, %v519
    %v548 = vpack.c.b16 %v522, %v521
    %v549 = vpack.c.b16 %v524, %v523
    %v550 = vpack.c.b16 %v526, %v525
    %v551 = vpack.c.b16 %v528, %v527
    %v552 = vpack.c.b16 %v530, %v529
    %v553 = vpack.c.b16 %v532, %v531
    %v554 = vpack.c.b16 %v534, %v533
    %v555 = vpack.c.b16 %v536, %v535
    %v556 = vpack.c.b16 %v538, %v537
    %v557 = vpack.c.b16 %v540, %v539
    %v558 = vpack.c.b16 %v542, %v541
    %575 = vmatprep.subr.bf16.mxu0 0
    %576 = vmatpush1.bf16.msra.mxu0 %v543
    %577 = vmatprep.subr.bf16.mxu0 0
    %578 = vmatpush1.bf16.msra.mxu0 %v544
    %579 = vmatprep.subr.bf16.mxu0 0
    %580 = vmatpush1.bf16.msra.mxu0 %v545
    %581 = vmatprep.subr.bf16.mxu0 0
    %582 = vmatpush1.bf16.msra.mxu0 %v546
    %583 = vmatprep.subr.bf16.mxu0 0
    %584 = vmatpush1.bf16.msra.mxu0 %v547
    %585 = vmatprep.subr.bf16.mxu0 0
    %586 = vmatpush1.bf16.msra.mxu0 %v548
    %587 = vmatprep.subr.bf16.mxu0 0
    %588 = vmatpush1.bf16.msra.mxu0 %v549
    %589 = vmatprep.subr.bf16.mxu0 0
    %590 = vmatpush1.bf16.msra.mxu0 %v550
    %591 = vmatprep.subr.bf16.mxu0 0
    %592 = vmatpush1.bf16.msra.mxu0 %v551
    %593 = vmatprep.subr.bf16.mxu0 0
    %594 = vmatpush1.bf16.msra.mxu0 %v552
    %595 = vmatprep.subr.bf16.mxu0 0
    %596 = vmatpush1.bf16.msra.mxu0 %v553
    %597 = vmatprep.subr.bf16.mxu0 0
    %598 = vmatpush1.bf16.msra.mxu0 %v554
    %599 = vmatprep.subr.bf16.mxu0 0
    %600 = vmatpush1.bf16.msra.mxu0 %v555
    %601 = vmatprep.subr.bf16.mxu0 0
    %602 = vmatpush1.bf16.msra.mxu0 %v556
    %603 = vmatprep.subr.bf16.mxu0 0
    %604 = vmatpush1.bf16.msra.mxu0 %v557
    %605 = vmatprep.subr.bf16.mxu0 0
    %606 = vmatpush1.bf16.msra.mxu0 %v558
    %607 = vmatprep.mubr.bf16.mxu0 %v331
    %608 = vmatmul.mubr.bf16.gmra.mrb[0].mxu0 %v330
    %v609 = vpop.f32.mrb[0].mxu0
    %v610 = vadd.f32 %v465, %v609
    %v611 = vpop.f32.mrb[0].mxu0
    %v612 = vpop.f32.mrb[0].mxu0
    %v613 = vadd.f32 %v468, %v612
    %v614 = vpop.f32.mrb[0].mxu0
    %615 = vmatprep.mubr.bf16.mxu0 %v333
    %616 = vmatmul.mubr.bf16.gmra.mrb[0].mxu0 %v332
    %v617 = vpop.f32.mrb[0].mxu0
    %v618 = vadd.f32 %v473, %v617
    %v619 = vpop.f32.mrb[0].mxu0
    %v620 = vpop.f32.mrb[0].mxu0
    %v621 = vadd.f32 %v476, %v620
    %v622 = vpop.f32.mrb[0].mxu0
    %623 = vdwg.mxu0
    %v624 = vld [vmem:[#allocation14] sm:$0x1]
    %v626 = vlaneseq
    %v627 = vshrl.u32 %v626, 7
    %v628 = vsub.s32 0, %v627
    %v629 = vrot.slane %v624, %v628
    %v631 = vadd.f32 %v610, %v629
    %v632 = vadd.f32 %v613, %v629
    %v633 = vadd.f32 %v618, %v629
    %v634 = vadd.f32 %v621, %v629
    %v635 = vsub.f32 0.0, %v631
    %v636 = vsub.f32 0.0, %v632
    %v637 = vsub.f32 0.0, %v633
    %v638 = vsub.f32 0.0, %v634
    %v639 = vmul.f32 %v635, 1.442695
    %v640 = vpow.pop %v639
    %v641 = vmul.f32 %v636, 1.442695
    %v642 = vpow.pop %v641
    %v643 = vmul.f32 %v637, 1.442695
    %v644 = vpow.pop %v643
    %v645 = vmul.f32 %v638, 1.442695
    %v646 = vpow.pop %v645
    %v647 = vadd.f32 %v640, 1.0
    %v648 = vadd.f32 %v642, 1.0
    %v649 = vadd.f32 %v644, 1.0
    %v650 = vadd.f32 %v646, 1.0
    %v651 = vrcp.pop %v647
    %v652 = vrcp.pop %v648
    %v653 = vrcp.pop %v649
    %v654 = vrcp.pop %v650
    %v655 = vmul.f32 %v631, %v651
    %v656 = vmul.f32 %v632, %v652
    %v657 = vmul.f32 %v633, %v653
    %v658 = vmul.f32 %v634, %v654
    %v659 = vsel %vm211, 1.0, %v195
    %v660 = vsel %vm211, 1.0, %v198
    %v661 = vsel %vm211, 1.0, %v203
    %v662 = vsel %vm211, 1.0, %v206
    %v663 = vmul.f32 %v655, %v659
    %v664 = vmul.f32 %v656, %v660
    %v665 = vmul.f32 %v657, %v661
    %v666 = vmul.f32 %v658, %v662
    %v667 = vpack.c.bf16 %v664, %v663
    %v668 = vpack.c.bf16 %v666, %v665
    %v671 = vunpack.c.l.b16 %v667
    %v672 = vunpack.c.h.b16 %v667
    %v673 = vunpack.c.l.b16 %v668
    %v674 = vunpack.c.h.b16 %v668
    %v675 = vpack.c.b16 %v671, %v671
    %v676 = vpack.c.b16 %v672, %v672
    %v677 = vpack.c.b16 %v673, %v673
    %v678 = vpack.c.b16 %v674, %v674
    %683 = vst [vmem:[#allocation16] sm:$0xf] %v675
    %684 = vst [vmem:[#allocation16 + $0x4] sm:$0xf] %v676
    %685 = vst [vmem:[#allocation16 + $0x8] sm:$0xf] %v677
    %686 = vst [vmem:[#allocation16 + $0xc] sm:$0xf] %v678
    // Predicated region
    $region66: #{tpu_custom_call.1} parent=1 // pred_check
      _
    $region67: #{tpu_custom_call.1} parent=1 // pred_check_branch
      %688 = sbr.rel (0) target = $region69
    $region68: #{tpu_custom_call.1} parent=1 // pred_region
      %s690 = ssub.s32 256, 256
      %691 = vsyncadd [#allocation4], %s690
      %s692 = sshll.u32 [#allocation16], 4
      %s693 = int_to_ptr.vmem [resolvable:$true] %s692
      %698 = dma.vmem_to_hbm [thread:$0]  %s693, 256, %s8, [#allocation4], 64, 64, 4
    $region69: #{tpu_custom_call.1} parent=1 // pred_fallthru
      _
    // Predicated region
    $region70: #{tpu_custom_call.1} parent=1 // pred_check
      _
    $region71: #{tpu_custom_call.1} parent=1 // pred_check_branch
      %700 = sbr.rel (0) target = $region73
    $region72: #{tpu_custom_call.1} parent=1 // pred_region
      %701 = dma.done [#allocation4], 256
    $region73: #{tpu_custom_call.1} parent=1 // pred_fallthru
      _
    %702 = vsyncpa [#allocation3], 1
    %703 = vsyncpa [#allocation6], 1
    %704 = vsyncpa [#allocation9], 1
    %705 = vsyncpa [#allocation12], 1
    %706 = vsyncpa [#allocation15], 1
    %707 = vsyncpa [#allocation4], 1

</llo_original>
